<compile_context>
chip_gen: v7x
topology: tpu7x:2x2x1
jax: 0.10.0
libtpu: 0.0.40
codegen_flags: <defaults>
</compile_context>

<pallas_src>
import functools
import math

import jax
import jax.numpy as jnp
from jax import lax
from jax.experimental import pallas as pl
from jax.experimental.pallas import tpu as pltpu

_BIG_NEG = -1e30     # finite mask value (causal diagonal always unmasked -> safe)


# ---------------------------------------------------------------- helpers ----
@functools.lru_cache(maxsize=None)
def _vmem_limit_bytes():
    """Generation-aware scoped-VMEM limit: physical capacity minus headroom.

    v7x (64 MiB physical)  -> ~48 MiB; v5e/v6e (128 MiB) -> ~112 MiB.
    """
    try:
        cap = int(pltpu.get_tpu_info().vmem_capacity_bytes)
    except Exception:                       # unknown chip / interpret mode
        cap = 64 * 1024 * 1024
    return int(max(cap - 16 * 1024 * 1024, 32 * 1024 * 1024))


@functools.lru_cache(maxsize=None)
def _default_tiles():
    """Bigger default tiles on 128-MiB-VMEM parts (v5e/v6e), smaller on v7x."""
    if _vmem_limit_bytes() >= 96 * 1024 * 1024:
        return dict(seq=1024, hidden=1024, vocab=4096, q=512)
    return dict(seq=512, hidden=512, vocab=2048, q=256)


def _cparams(dims):
    return pltpu.CompilerParams(dimension_semantics=dims,
                                vmem_limit_bytes=_vmem_limit_bytes())


def _const_spec(shape):
    """BlockSpec for grid-invariant (constant) operands: single-buffered."""
    nd = len(shape)
    return pl.BlockSpec(shape, lambda *_: (0,) * nd,
                        pipeline_mode=pl.Buffered(1))


def _ln(x, w, b, eps=1e-5):
    # PyTorch nn.LayerNorm over the last axis (biased variance), f32 stats.
    mu = jnp.mean(x, axis=-1, keepdims=True)
    var = jnp.mean(jnp.square(x - mu), axis=-1, keepdims=True)
    return (x - mu) * lax.rsqrt(var + eps) * w + b


def _pick_tile(n, target, quantum):
    """Largest multiple of `quantum` dividing n and <= target (n if none)."""
    if n <= target:
        return n
    t = (target // quantum) * quantum
    while t >= quantum:
        if n % t == 0:
            return t
        t -= quantum
    return n


# ------------------------------------------------------------- QKV kernel ----
def qkv_kernel(x_ref, ln1w_ref, ln1b_ref, wqkv_ref, bqkv_ref, o_ref):
    xn = _ln(x_ref[0], ln1w_ref[...], ln1b_ref[...]).astype(jnp.bfloat16)
    o_ref[0] = (jnp.dot(xn, wqkv_ref[...], preferred_element_type=jnp.float32)
                + bqkv_ref[...]).astype(jnp.bfloat16)


def run_qkv(x, blk, *, seq_tile):
    B, T, D = x.shape
    tt = _pick_tile(T, seq_tile, 8)
    return pl.pallas_call(
        qkv_kernel,
        out_shape=jax.ShapeDtypeStruct((B, T, 3 * D), jnp.bfloat16),
        grid=(B, T // tt),
        in_specs=[pl.BlockSpec((1, tt, D), lambda b, t: (b, t, 0)),
                  _const_spec((1, D)), _const_spec((1, D)),
                  _const_spec((D, 3 * D)), _const_spec((1, 3 * D))],
        out_specs=pl.BlockSpec((1, tt, 3 * D), lambda b, t: (b, t, 0)),
        compiler_params=_cparams(("parallel", "parallel")),
    )(x, blk["ln1_w"], blk["ln1_b"], blk["wqkv"], blk["bqkv"])


# ------------------------------------------------- attention core kernel -----
def attn_core_kernel(xq_ref, qkvq_ref, qkv_ref, wproj_ref, bproj_ref, o_ref,
                     ctx_ref, *, n_heads):
    x = xq_ref[0]                                 # (tq, D) f32 residual tile
    tq, D = x.shape
    T = qkv_ref.shape[1]
    hd = D // n_heads
    scale = 1.0 / math.sqrt(hd)
    q0 = pl.program_id(1) * tq                    # global row of this q tile

    row = lax.broadcasted_iota(jnp.int32, (tq, T), 0) + q0
    col = lax.broadcasted_iota(jnp.int32, (tq, T), 1)
    causal = col <= row

    # Per-head causal softmax; each head's context is written directly into a
    # lane-dense (tq, D) VMEM scratch at its head offset (no lane-axis concat).
    # TODO(synk): for very long T, switch to a KV-tiled online-softmax (flash)
    # formulation; not needed at these context lengths.
    for h in range(n_heads):
        lo = h * hd
        q_h = qkvq_ref[0, :, lo:lo + hd]                       # (tq, hd) bf16
        k_h = qkv_ref[0, :, D + lo:D + lo + hd]                # (T, hd)  bf16
        v_h = qkv_ref[0, :, 2 * D + lo:2 * D + lo + hd]        # (T, hd)  bf16
        s = lax.dot_general(q_h, k_h, (((1,), (1,)), ((), ())),
                            preferred_element_type=jnp.float32) * scale
        s = jnp.where(causal, s, _BIG_NEG)
        m = jnp.max(s, axis=-1, keepdims=True)
        p = jnp.exp(s - m)
        l = jnp.sum(p, axis=-1, keepdims=True)
        ctx_h = jnp.dot(p.astype(jnp.bfloat16), v_h,
                        preferred_element_type=jnp.float32)    # (tq, hd) f32
        # NOTE: approx reciprocal (~2^-12 rel. err) on the softmax denominator.
        ctx_ref[:, lo:lo + hd] = ctx_h * pl.reciprocal(l, approx=True)

    y = jnp.dot(ctx_ref[...].astype(jnp.bfloat16), wproj_ref[...],
                preferred_element_type=jnp.float32) + bproj_ref[...]
    o_ref[0] = x + y                              # residual 1, in-place store


def run_attention(x, qkv, blk, *, n_heads, q_tile):
    B, T, D = x.shape
    tq = _pick_tile(T, q_tile, 8)
    return pl.pallas_call(
        functools.partial(attn_core_kernel, n_heads=n_heads),
        out_shape=jax.ShapeDtypeStruct((B, T, D), jnp.float32),
        grid=(B, T // tq),
        in_specs=[pl.BlockSpec((1, tq, D), lambda b, q: (b, q, 0)),      # x tile
                  pl.BlockSpec((1, tq, 3 * D), lambda b, q: (b, q, 0)),  # Q rows
                  pl.BlockSpec((1, T, 3 * D), lambda b, q: (b, 0, 0)),   # K/V
                  _const_spec((D, D)), _const_spec((1, D))],
        out_specs=pl.BlockSpec((1, tq, D), lambda b, q: (b, q, 0)),
        scratch_shapes=[pltpu.VMEM((tq, D), jnp.float32)],
        # x reads stay inside the aliased (b, q) block -> in-place is safe.
        input_output_aliases={0: 0},
        compiler_params=_cparams(("parallel", "parallel")),
    )(x, qkv, qkv, blk["wproj"], blk["bproj"])


# ------------------------------------------------------------- MLP kernel ----
def mlp_kernel(x_ref, ln2w_ref, ln2b_ref, w1_ref, b1_ref, w2_ref, b2_ref,
               o_ref, xn_ref):
    h = pl.program_id(2)                          # hidden-chunk reduction axis

    @pl.when(h == 0)
    def _():
        x = x_ref[0]
        # cache LN2(x) once per (b, t) tile; reused for every hidden chunk
        xn_ref[...] = _ln(x, ln2w_ref[...], ln2b_ref[...]).astype(jnp.bfloat16)
        o_ref[0] = x + b2_ref[...]                # residual + output bias once

    h1 = jnp.dot(xn_ref[...], w1_ref[...],
                 preferred_element_type=jnp.float32) + b1_ref[...]
    h1 = jax.nn.gelu(h1, approximate=False).astype(jnp.bfloat16)  # exact GELU
    # accumulate directly into the resident output block (no extra scratch)
    o_ref[0] += jnp.dot(h1, w2_ref[...], preferred_element_type=jnp.float32)


def mlp_lnf_kernel(x_ref, ln2w_ref, ln2b_ref, w1_ref, b1_ref, w2_ref, b2_ref,
                   lnfw_ref, lnfb_ref, o_ref, acc_ref, xn_ref):
    # Last layer: fuse the final LayerNorm into the MLP epilogue, emit bf16.
    h = pl.program_id(2)

    @pl.when(h == 0)
    def _():
        x = x_ref[0]
        xn_ref[...] = _ln(x, ln2w_ref[...], ln2b_ref[...]).astype(jnp.bfloat16)
        acc_ref[...] = x + b2_ref[...]

    h1 = jnp.dot(xn_ref[...], w1_ref[...],
                 preferred_element_type=jnp.float32) + b1_ref[...]
    h1 = jax.nn.gelu(h1, approximate=False).astype(jnp.bfloat16)
    acc_ref[...] += jnp.dot(h1, w2_ref[...], preferred_element_type=jnp.float32)

    @pl.when(h == pl.num_programs(2) - 1)
    def _():
        o_ref[0] = _ln(acc_ref[...], lnfw_ref[...], lnfb_ref[...]
                       ).astype(jnp.bfloat16)


def run_mlp(x, blk, *, seq_tile, hidden_tile, final_ln=None):
    B, T, D = x.shape
    Dh = blk["w1"].shape[1]
    tt = _pick_tile(T, seq_tile, 8)
    th = _pick_tile(Dh, hidden_tile, 128)
    grid = (B, T // tt, Dh // th)
    in_specs = [
        pl.BlockSpec((1, tt, D), lambda b, t, h: (b, t, 0)),   # x
        _const_spec((1, D)), _const_spec((1, D)),              # ln2 w/b
        pl.BlockSpec((D, th), lambda b, t, h: (0, h)),         # W1 chunk
        pl.BlockSpec((1, th), lambda b, t, h: (0, h)),         # b1 chunk
        pl.BlockSpec((th, D), lambda b, t, h: (h, 0)),         # W2 chunk
        _const_spec((1, D)),                                   # b2
    ]
    out_spec = pl.BlockSpec((1, tt, D), lambda b, t, h: (b, t, 0))
    args = [x, blk["ln2_w"], blk["ln2_b"], blk["w1"], blk["b1"], blk["w2"],
            blk["b2"]]
    cp = _cparams(("parallel", "parallel", "arbitrary"))

    if final_ln is None:
        return pl.pallas_call(
            mlp_kernel,
            out_shape=jax.ShapeDtypeStruct((B, T, D), jnp.float32),
            grid=grid, in_specs=in_specs, out_specs=out_spec,
            scratch_shapes=[pltpu.VMEM((tt, D), jnp.bfloat16)],     # cached LN2
            input_output_aliases={0: 0},                            # in-place
            compiler_params=cp,
        )(*args)

    lnf_w, lnf_b = final_ln
    return pl.pallas_call(
        mlp_lnf_kernel,
        out_shape=jax.ShapeDtypeStruct((B, T, D), jnp.bfloat16),    # bf16 heads
        grid=grid,
        in_specs=in_specs + [_const_spec((1, D)), _const_spec((1, D))],
        out_specs=out_spec,
        scratch_shapes=[pltpu.VMEM((tt, D), jnp.float32),           # f32 acc
                        pltpu.VMEM((tt, D), jnp.bfloat16)],         # cached LN2
        compiler_params=cp,
    )(*args, lnf_w, lnf_b)


# -------------------------------------------------------------- head kernel --
def head_kernel(x_ref, w_ref, o_ref):
    o_ref[0] = jnp.dot(x_ref[0], w_ref[...], preferred_element_type=jnp.float32)


def run_head(x, w_t, *, seq_tile, vocab_tile):
    # x: (B, S, D) bf16, w_t: (D, V) bf16 (pre-transposed nn.Linear, no bias).
    # Weight-stationary grid: vocab axis outermost so each (D, tv) weight tile
    # is streamed from HBM once per full (B, S) sweep.
    B, S, D = x.shape
    V = w_t.shape[1]
    ts = _pick_tile(S, seq_tile, 8)
    tv = _pick_tile(V, vocab_tile, 128)
    return pl.pallas_call(
        head_kernel,
        out_shape=jax.ShapeDtypeStruct((B, S, V), jnp.float32),
        grid=(V // tv, B, S // ts),
        in_specs=[pl.BlockSpec((1, ts, D), lambda v, b, s: (b, s, 0)),
                  pl.BlockSpec((D, tv), lambda v, b, s: (0, v))],
        out_specs=pl.BlockSpec((1, ts, tv), lambda v, b, s: (b, s, v)),
        compiler_params=_cparams(("parallel", "parallel", "parallel")),
    )(x, w_t)


# ------------------------------------------------------------------ params ---
def make_params(key, *, vocab_txt, vocab_img, embed_dim, ctx_txt, ctx_img,
                n_layers):
    D = embed_dim

    def nrm(shape, dtype=jnp.float32, mean=0.0):
        nonlocal key
        key, sub = jax.random.split(key)
        w = mean + 0.02 * jax.random.normal(sub, shape, jnp.float32)
        return w.astype(dtype)

    bf16 = jnp.bfloat16
    params = {
        "tok_emb_txt": nrm((vocab_txt, D)),
        "tok_emb_img": nrm((vocab_img, D)),
        "pos_emb_txt": nrm((ctx_txt, D)),
        "pos_emb_img": nrm((ctx_img, D)),
        "ln_f_w": nrm((1, D), mean=1.0),
        "ln_f_b": nrm((1, D)),
        # LM heads pre-transposed to (D, V), stored bf16 for the MXU.
        "head_txt_wT": nrm((D, vocab_txt), bf16),
        "head_img_wT": nrm((D, vocab_img), bf16),
        "blocks": [],
    }
    # NOTE: PyTorch init zeroes biases / LN=(1,0); small random values here so
    # those code paths are numerically exercised.  Semantics are unchanged.
    for _ in range(n_layers):
        blk = {
            "ln1_w": nrm((1, D), mean=1.0), "ln1_b": nrm((1, D)),
            "wqkv": nrm((D, 3 * D), bf16),          # fused [Wq | Wk | Wv]^T
            "bqkv": nrm((1, 3 * D)),
            "wproj": nrm((D, D), bf16), "bproj": nrm((1, D)),
            "ln2_w": nrm((1, D), mean=1.0), "ln2_b": nrm((1, D)),
            "w1": nrm((D, 4 * D), bf16), "b1": nrm((1, 4 * D)),
            "w2": nrm((4 * D, D), bf16), "b2": nrm((1, D)),
        }
        params["blocks"].append(blk)
    return params


# ----------------------------------------------------------------- forward ---
def transformer1d_forward(params, images, texts, pos_images, pos_texts, *,
                          n_heads, ctx_len_txt, seq_tile=None, hidden_tile=None,
                          vocab_tile=None, q_tile=None):
    d = _default_tiles()
    seq_tile = seq_tile or d["seq"]
    hidden_tile = hidden_tile or d["hidden"]
    vocab_tile = vocab_tile or d["vocab"]
    q_tile = q_tile or d["q"]

    # embedding gathers + positional add (JAX glue), dropout = identity (eval)
    t = params["tok_emb_txt"][texts] + params["pos_emb_txt"][pos_texts]
    im = params["tok_emb_img"][images] + params["pos_emb_img"][pos_images]
    x = jnp.concatenate([t, im], axis=1).astype(jnp.float32)   # (B, N+T, D)

    blocks = params["blocks"]
    assert len(blocks) >= 1
    for li, blk in enumerate(blocks):
        qkv = run_qkv(x, blk, seq_tile=seq_tile)                # LN1 + QKV proj
        x = run_attention(x, qkv, blk, n_heads=n_heads, q_tile=q_tile)
        final = (params["ln_f_w"], params["ln_f_b"]) if li == len(blocks) - 1 \
            else None
        x = run_mlp(x, blk, seq_tile=seq_tile, hidden_tile=hidden_tile,
                    final_ln=final)                              # x + MLP(LN2 x)
    # x is now LN_f(residual) in bf16 -> feed the LM heads directly.

    N = ctx_len_txt
    logits_txt = run_head(x[:, :N - 1], params["head_txt_wT"],
                          seq_tile=seq_tile, vocab_tile=vocab_tile)
    logits_img = run_head(x[:, N - 1:-1], params["head_img_wT"],
                          seq_tile=seq_tile, vocab_tile=vocab_tile)
    return logits_img, logits_txt
    # TODO(synk): `past` / `prompt` / cross-attention paths of the module are
    # not exercised by this forward and are not implemented.


# ------------------------------------------------------ pure-JAX reference ---
def reference_forward(params, images, texts, pos_images, pos_texts, *,
                      n_heads, ctx_len_txt):
    bf16, f32 = jnp.bfloat16, jnp.float32
    t = params["tok_emb_txt"][texts] + params["pos_emb_txt"][pos_texts]
    im = params["tok_emb_img"][images] + params["pos_emb_img"][pos_images]
    x = jnp.concatenate([t, im], axis=1).astype(f32)
    B, T, D = x.shape
    H = n_heads
    hd = D // H
    scale = 1.0 / math.sqrt(hd)
    row = lax.broadcasted_iota(jnp.int32, (T, T), 0)
    col = lax.broadcasted_iota(jnp.int32, (T, T), 1)
    causal = col <= row

    for blk in params["blocks"]:
        xn = _ln(x, blk["ln1_w"], blk["ln1_b"]).astype(bf16)
        qkv = (jnp.dot(xn, blk["wqkv"], preferred_element_type=f32)
               + blk["bqkv"]).astype(bf16)
        q = qkv[..., :D].reshape(B, T, H, hd)
        k = qkv[..., D:2 * D].reshape(B, T, H, hd)
        v = qkv[..., 2 * D:].reshape(B, T, H, hd)
        s = jnp.einsum("bqhd,bkhd->bhqk", q, k,
                       preferred_element_type=f32) * scale
        s = jnp.where(causal, s, _BIG_NEG)
        p = jax.nn.softmax(s, axis=-1)
        ctx = jnp.einsum("bhqk,bkhd->bqhd", p.astype(bf16), v,
                         preferred_element_type=f32).reshape(B, T, D)
        x = x + jnp.dot(ctx.astype(bf16), blk["wproj"],
                        preferred_element_type=f32) + blk["bproj"]
        xn2 = _ln(x, blk["ln2_w"], blk["ln2_b"]).astype(bf16)
        h1 = jnp.dot(xn2, blk["w1"], preferred_element_type=f32) + blk["b1"]
        h1 = jax.nn.gelu(h1, approximate=False).astype(bf16)
        x = x + jnp.dot(h1, blk["w2"], preferred_element_type=f32) + blk["b2"]

    x = _ln(x, params["ln_f_w"], params["ln_f_b"]).astype(bf16)
    N = ctx_len_txt
    lt = jnp.dot(x[:, :N - 1], params["head_txt_wT"], preferred_element_type=f32)
    li = jnp.dot(x[:, N - 1:-1], params["head_img_wT"],
                 preferred_element_type=f32)
    return li, lt


# -------------------------------------------------------------------- main ---
if __name__ == "__main__":
    VOCAB_TXT, VOCAB_IMG = 32, 64
    EMBED_DIM = 64
    N_HEADS = 4
    CTX_TXT, CTX_IMG = 8, 16
    N_LAYERS = 2
    B = 2

    key = jax.random.PRNGKey(0)
    kp, ki, kt = jax.random.split(key, 3)

    params = make_params(kp, vocab_txt=VOCAB_TXT, vocab_img=VOCAB_IMG,
                         embed_dim=EMBED_DIM, ctx_txt=CTX_TXT, ctx_img=CTX_IMG,
                         n_layers=N_LAYERS)

    images = jax.random.randint(ki, (B, CTX_IMG), 0, VOCAB_IMG, dtype=jnp.int32)
    texts = jax.random.randint(kt, (B, CTX_TXT), 0, VOCAB_TXT, dtype=jnp.int32)
    pos_images = jnp.broadcast_to(jnp.arange(CTX_IMG, dtype=jnp.int32),
                                  (B, CTX_IMG))
    pos_texts = jnp.broadcast_to(jnp.arange(CTX_TXT, dtype=jnp.int32),
                                 (B, CTX_TXT))

    # small tiles so the multi-tile / accumulator / query-tiling code paths are
    # actually exercised at these toy shapes (defaults are sized per TPU gen).
    logits_img, logits_txt = transformer1d_forward(
        params, images, texts, pos_images, pos_texts,
        n_heads=N_HEADS, ctx_len_txt=CTX_TXT,
        seq_tile=8, hidden_tile=128, vocab_tile=2048, q_tile=8)
    jax.block_until_ready((logits_img, logits_txt))

    ref_img, ref_txt = reference_forward(
        params, images, texts, pos_images, pos_texts,
        n_heads=N_HEADS, ctx_len_txt=CTX_TXT)

    assert logits_img.shape == (B, CTX_IMG, VOCAB_IMG)
    assert logits_txt.shape == (B, CTX_TXT - 1, VOCAB_TXT)
    assert jnp.all(jnp.isfinite(logits_img)) and jnp.all(jnp.isfinite(logits_txt))
    err_i = float(jnp.max(jnp.abs(logits_img - ref_img)))
    err_t = float(jnp.max(jnp.abs(logits_txt - ref_txt)))
    assert jnp.allclose(logits_img, ref_img, atol=2e-2, rtol=2e-2), err_i
    assert jnp.allclose(logits_txt, ref_txt, atol=2e-2, rtol=2e-2), err_t
    print("KERNEL_OK")
</pallas_src>

<mosaic_0001>
module attributes {stable_mosaic.version = 11 : i64} {
  func.func @qkv_kernel(%arg0: i32, %arg1: i32, %arg2: memref<1x8x64xf32, #tpu.memory_space<vmem>>, %arg3: memref<1x64xf32, #tpu.memory_space<vmem>>, %arg4: memref<1x64xf32, #tpu.memory_space<vmem>>, %arg5: memref<64x192xbf16, #tpu.memory_space<vmem>>, %arg6: memref<1x192xf32, #tpu.memory_space<vmem>>, %arg7: memref<1x8x192xbf16, #tpu.memory_space<vmem>>) attributes {dimension_semantics = [#tpu.dimension_semantics<parallel>, #tpu.dimension_semantics<parallel>], iteration_bounds = array<i64: 2, 3>, scalar_prefetch = 0 : i64, scratch_operands = 0 : i64, tpu.core_type = #tpu.core_type<tc>, window_params = [{transform_indices = @transform_0, window_bounds = array<i64: 1, 8, 64>}, {pipeline_mode = #tpu.pipeline_mode<synchronous>, transform_indices = @transform_1, window_bounds = array<i64: 1, 64>}, {pipeline_mode = #tpu.pipeline_mode<synchronous>, transform_indices = @transform_2, window_bounds = array<i64: 1, 64>}, {pipeline_mode = #tpu.pipeline_mode<synchronous>, transform_indices = @transform_3, window_bounds = array<i64: 64, 192>}, {pipeline_mode = #tpu.pipeline_mode<synchronous>, transform_indices = @transform_4, window_bounds = array<i64: 1, 192>}, {transform_indices = @transform_5, window_bounds = array<i64: 1, 8, 192>}]} {
    %c0 = arith.constant 0 : index
    %c0_0 = arith.constant 0 : index
    %c0_1 = arith.constant 0 : index
    %0 = vector.load %arg2[%c0, %c0_0, %c0_1] : memref<1x8x64xf32, #tpu.memory_space<vmem>>, vector<1x8x64xf32>
    %1 = vector.shape_cast %0 : vector<1x8x64xf32> to vector<8x64xf32>
    %c0_2 = arith.constant 0 : index
    %c0_3 = arith.constant 0 : index
    %2 = vector.load %arg3[%c0_2, %c0_3] : memref<1x64xf32, #tpu.memory_space<vmem>>, vector<1x64xf32>
    %c0_4 = arith.constant 0 : index
    %c0_5 = arith.constant 0 : index
    %3 = vector.load %arg4[%c0_4, %c0_5] : memref<1x64xf32, #tpu.memory_space<vmem>>, vector<1x64xf32>
    %cst = arith.constant dense<0.000000e+00> : vector<8xf32>
    %4 = vector.multi_reduction <add>, %1, %cst [1] : vector<8x64xf32> to vector<8xf32>
    %5 = vector.shape_cast %4 : vector<8xf32> to vector<8x1xf32>
    %cst_6 = arith.constant 6.400000e+01 : f32
    %6 = vector.broadcast %cst_6 : f32 to vector<8x1xf32>
    %7 = arith.divf %5, %6 : vector<8x1xf32>
    %8 = vector.broadcast %7 : vector<8x1xf32> to vector<8x64xf32>
    %9 = arith.subf %1, %8 : vector<8x64xf32>
    %10 = arith.mulf %9, %9 : vector<8x64xf32>
    %cst_7 = arith.constant dense<0.000000e+00> : vector<8xf32>
    %11 = vector.multi_reduction <add>, %10, %cst_7 [1] : vector<8x64xf32> to vector<8xf32>
    %12 = vector.shape_cast %11 : vector<8xf32> to vector<8x1xf32>
    %cst_8 = arith.constant 6.400000e+01 : f32
    %13 = vector.broadcast %cst_8 : f32 to vector<8x1xf32>
    %14 = arith.divf %12, %13 : vector<8x1xf32>
    %15 = vector.broadcast %7 : vector<8x1xf32> to vector<8x64xf32>
    %16 = arith.subf %1, %15 : vector<8x64xf32>
    %cst_9 = arith.constant 9.99999974E-6 : f32
    %17 = vector.broadcast %cst_9 : f32 to vector<8x1xf32>
    %18 = arith.addf %14, %17 : vector<8x1xf32>
    %19 = math.rsqrt %18 : vector<8x1xf32>
    %20 = vector.broadcast %19 : vector<8x1xf32> to vector<8x64xf32>
    %21 = arith.mulf %16, %20 : vector<8x64xf32>
    %22 = vector.broadcast %2 : vector<1x64xf32> to vector<8x64xf32>
    %23 = arith.mulf %21, %22 : vector<8x64xf32>
    %24 = vector.broadcast %3 : vector<1x64xf32> to vector<8x64xf32>
    %25 = arith.addf %23, %24 : vector<8x64xf32>
    %26 = arith.truncf %25 : vector<8x64xf32> to vector<8x64xbf16>
    %c0_10 = arith.constant 0 : index
    %c0_11 = arith.constant 0 : index
    %27 = vector.load %arg5[%c0_10, %c0_11] : memref<64x192xbf16, #tpu.memory_space<vmem>>, vector<64x192xbf16>
    %cst_12 = arith.constant dense<0.000000e+00> : vector<8x192xf32>
    %28 = tpu.matmul %26, %27, %cst_12 {dimension_numbers = #tpu.dot_dimension_numbers<[1], [0], [0], [1], [0, 0, 1, 1], [], []>} : vector<8x64xbf16>, vector<64x192xbf16>, vector<8x192xf32> -> vector<8x192xf32>
    %c0_13 = arith.constant 0 : index
    %c0_14 = arith.constant 0 : index
    %29 = vector.load %arg6[%c0_13, %c0_14] : memref<1x192xf32, #tpu.memory_space<vmem>>, vector<1x192xf32>
    %30 = vector.broadcast %29 : vector<1x192xf32> to vector<8x192xf32>
    %31 = arith.addf %28, %30 : vector<8x192xf32>
    %32 = arith.truncf %31 : vector<8x192xf32> to vector<8x192xbf16>
    %c0_15 = arith.constant 0 : index
    %c0_16 = arith.constant 0 : index
    %c0_17 = arith.constant 0 : index
    %33 = vector.load %arg7[%c0_15, %c0_16, %c0_17] : memref<1x8x192xbf16, #tpu.memory_space<vmem>>, vector<1x8x192xbf16>
    %34 = vector.shape_cast %33 : vector<1x8x192xbf16> to vector<8x192xbf16>
    %35 = vector.shape_cast %32 : vector<8x192xbf16> to vector<1x8x192xbf16>
    tpu.vector_store %arg7[%c0_15, %c0_16, %c0_17], %35 {strides = array<i32>} : memref<1x8x192xbf16, #tpu.memory_space<vmem>>, vector<1x8x192xbf16>,
    return
  }
  func.func @transform_0(%arg0: i32, %arg1: i32) -> (i32, i32, i32) {
    %c0_i32 = arith.constant 0 : i32
    %c0_i32_0 = arith.constant 0 : i32
    return %arg0, %arg1, %c0_i32 : i32, i32, i32
  }
  func.func @transform_1(%arg0: i32, %arg1: i32) -> (i32, i32) {
    %c0_i32 = arith.constant 0 : i32
    %c0_i32_0 = arith.constant 0 : i32
    %c0_i32_1 = arith.constant 0 : i32
    return %c0_i32, %c0_i32_0 : i32, i32
  }
  func.func @transform_2(%arg0: i32, %arg1: i32) -> (i32, i32) {
    %c0_i32 = arith.constant 0 : i32
    %c0_i32_0 = arith.constant 0 : i32
    %c0_i32_1 = arith.constant 0 : i32
    return %c0_i32, %c0_i32_0 : i32, i32
  }
  func.func @transform_3(%arg0: i32, %arg1: i32) -> (i32, i32) {
    %c0_i32 = arith.constant 0 : i32
    %c0_i32_0 = arith.constant 0 : i32
    %c0_i32_1 = arith.constant 0 : i32
    return %c0_i32, %c0_i32_0 : i32, i32
  }
  func.func @transform_4(%arg0: i32, %arg1: i32) -> (i32, i32) {
    %c0_i32 = arith.constant 0 : i32
    %c0_i32_0 = arith.constant 0 : i32
    %c0_i32_1 = arith.constant 0 : i32
    return %c0_i32, %c0_i32_0 : i32, i32
  }
  func.func @transform_5(%arg0: i32, %arg1: i32) -> (i32, i32, i32) {
    %c0_i32 = arith.constant 0 : i32
    %c0_i32_0 = arith.constant 0 : i32
    return %arg0, %arg1, %c0_i32 : i32, i32, i32
  }
}

</mosaic_0001>

<llo_original>
// kernel: tpu_custom_call.1
$region0: #{tpu_custom_call.1}
  #allocation0 [shape = 'u32[]', space=smem, size = 0x4, offset = 0x4, fixed_abs, tag = 'smem constant byte address 0x4 - core index']
  #allocation1 [shape = 'u32[144,128]{1,0:T(1,128)}', space=vmem, size = 0x12000, scoped, tag = 'internal scratch']
  %s0 = inlined_call_operand.hbm [shape: f32[2,24,64], index: 0, kind: input, shape index: {}]
  %s1 = inlined_call_operand.vmem [shape: f32[1,64], index: 1, kind: input, shape index: {}]
  %s2 = inlined_call_operand.vmem [shape: f32[1,64], index: 2, kind: input, shape index: {}]
  %s3 = inlined_call_operand.hbm [shape: bf16[64,192], index: 3, kind: input, shape index: {}]
  %s4 = inlined_call_operand.vmem [shape: f32[1,192], index: 4, kind: input, shape index: {}]
  %s5 = inlined_call_operand.hbm [shape: bf16[2,24,192], index: 5, kind: output, shape index: {}]
  %s6 = sld [smem:[#allocation0]]
  $region61: #{tpu_custom_call.1} parent=0
    _
  %s8 = ssub.s32 1, %s6
  %s9 = scalar_select 0, %s8, %s6
  $region1: #{tpu_custom_call.1} parent=0
    #allocation2 [shape = 'u8[8192]{0}', space=vmem, size = 0x2000, scoped, tag = 'input window, operand 0']
    #allocation3 [shape = 's32[2]{0}', space=sflag, size = 0x8, scoped, tag = 'scoped memory for tpu_custom_call.1']
    #allocation4 [shape = 's32[2]{0}', space=sflag, size = 0x8, scoped, tag = 'scoped memory for tpu_custom_call.1']
    #allocation5 [shape = 'u8[32768]{0}', space=vmem, size = 0x8000, scoped, tag = 'input window, operand 3, single buffered']
    #allocation6 [shape = 's32[1]{0}', space=sflag, size = 0x4, scoped, tag = 'scoped memory for tpu_custom_call.1']
    #allocation7 [shape = 'u8[8192]{0}', space=vmem, size = 0x2000, scoped, tag = 'output window, operand 0']
    %10 = vsyncpa [#allocation3], 0
    %s11 = scalar_lea.sflag [#allocation3], 1
    %12 = vsyncpa %s11, 0
    %13 = vsyncpa [#allocation6], 0
    %14 = vsyncpa [#allocation4], 0
    %s15 = scalar_lea.sflag [#allocation4], 1
    %16 = vsyncpa %s15, 0
    loop: start=0, step=1, limit=8
    $region2: #{tpu_custom_call.1} parent=1 // loop_pre_header
      _
    $region3: #{tpu_custom_call.1} parent=1 // loop_header
      %s18 = sphi 0, %s22
      %p19 = scmp.ge.s32.totalorder %s18, 8
      %s25 = sphi 0, %s37
      %s26 = sphi 0, %s33
      %s27 = sphi 0, %s25
      %s28 = sphi 0, %s26
      %s29 = sphi 0, %s27
      %s30 = sphi 0, %s28
      %s42 = sphi 0, %s44
      %s45 = sphi 0, %s42
      %s46 = sphi 0, %s45
      %s62 = sphi 0, %s46
      %s66 = sphi 0, %s66
      %s68 = sphi 0, %s66
      %s69 = sphi 0, %s68
      %s83 = sphi 0, %s69
      %s87 = sphi 0, %s87
      %s89 = sphi 0, %s87
      %s90 = sphi 0, %s89
      %s104 = sphi 0, %s90
      %s108 = sphi 0, %s108
      %s110 = sphi 0, %s108
      %s111 = sphi 0, %s110
      %s125 = sphi 0, %s111
      %s129 = sphi 0, %s129
      %s131 = sphi 0, %s129
      %s132 = sphi 0, %s131
      %s146 = sphi 0, %s132
      %s154 = sphi 0, %s156
      %s157 = sphi 0, %s154
      %s158 = sphi 0, %s157
      %s174 = sphi 0, %s158
    $region4: #{tpu_custom_call.1} parent=1 // loop_header_branch
      %21 = sbr.rel (%p19) target = $region8
    $region5: #{tpu_custom_call.1} parent=1 // loop_body
      %s23 = ssub.s32 %s18, 1
      %s24 = ssub.s32 %s18, 2
      %s31 = sadd.s32 1, %s26
      %p32 = scmp.ge.s32.totalorder %s31, 3
      %s33 = scalar_select %p32, 0, %s31
      %s34 = sadd.s32 1, %s25
      %s35 = scalar_select %p32, %s34, %s25
      %p36 = scmp.ge.s32.totalorder %s35, 2
      %s37 = scalar_select %p36, 0, %s35
      %s38 = ssub.s32 %s25, %s37
      %s39 = ssub.s32 %s26, %s33
      %s40 = sor.u32 %s38, %s39
      %p41 = scmp.eq.s32.totalorder %s40, 0
      %s43 = sadd.s32 %s42, 1
      %s44 = scalar_select %p41, %s42, %s43
      %p47 = pneg %p41
      %p48 = scmp.eq.s32.totalorder %s18, 5
      %p49 = por %p47, %p48
      %p50 = scmp.ne.s32.totalorder %s42, %s45
      %p51 = scmp.eq.s32.totalorder %s18, 0
      %p52 = por %p50, %p51
      %p53 = scmp.ne.s32.totalorder %s42, %s45
      %p54 = scmp.eq.s32.totalorder %s23, 5
      %p55 = por %p53, %p54
      %p56 = scmp.ne.s32.totalorder %s45, %s46
      %p57 = scmp.eq.s32.totalorder %s23, 0
      %p58 = por %p56, %p57
      %p59 = scmp.ne.s32.totalorder %s45, %s46
      %p60 = scmp.eq.s32.totalorder %s24, 5
      %p61 = por %p59, %p60
      %p63 = scmp.ne.s32.totalorder %s46, %s62
      %p64 = scmp.eq.s32.totalorder %s24, 0
      %p65 = por %p63, %p64
      %s67 = sadd.s32 %s66, 1
      %p70 = scmp.eq.s32.totalorder %s18, 5
      %p71 = scmp.ne.s32.totalorder %s66, %s68
      %p72 = scmp.eq.s32.totalorder %s18, 0
      %p73 = por %p71, %p72
      %p74 = scmp.ne.s32.totalorder %s66, %s68
      %p75 = scmp.eq.s32.totalorder %s23, 5
      %p76 = por %p74, %p75
      %p77 = scmp.ne.s32.totalorder %s68, %s69
      %p78 = scmp.eq.s32.totalorder %s23, 0
      %p79 = por %p77, %p78
      %p80 = scmp.ne.s32.totalorder %s68, %s69
      %p81 = scmp.eq.s32.totalorder %s24, 5
      %p82 = por %p80, %p81
      %p84 = scmp.ne.s32.totalorder %s69, %s83
      %p85 = scmp.eq.s32.totalorder %s24, 0
      %p86 = por %p84, %p85
      %s88 = sadd.s32 %s87, 1
      %p91 = scmp.eq.s32.totalorder %s18, 5
      %p92 = scmp.ne.s32.totalorder %s87, %s89
      %p93 = scmp.eq.s32.totalorder %s18, 0
      %p94 = por %p92, %p93
      %p95 = scmp.ne.s32.totalorder %s87, %s89
      %p96 = scmp.eq.s32.totalorder %s23, 5
      %p97 = por %p95, %p96
      %p98 = scmp.ne.s32.totalorder %s89, %s90
      %p99 = scmp.eq.s32.totalorder %s23, 0
      %p100 = por %p98, %p99
      %p101 = scmp.ne.s32.totalorder %s89, %s90
      %p102 = scmp.eq.s32.totalorder %s24, 5
      %p103 = por %p101, %p102
      %p105 = scmp.ne.s32.totalorder %s90, %s104
      %p106 = scmp.eq.s32.totalorder %s24, 0
      %p107 = por %p105, %p106
      %s109 = sadd.s32 %s108, 1
      %p112 = scmp.eq.s32.totalorder %s18, 5
      %p113 = scmp.ne.s32.totalorder %s108, %s110
      %p114 = scmp.eq.s32.totalorder %s18, 0
      %p115 = por %p113, %p114
      %p116 = scmp.ne.s32.totalorder %s108, %s110
      %p117 = scmp.eq.s32.totalorder %s23, 5
      %p118 = por %p116, %p117
      %p119 = scmp.ne.s32.totalorder %s110, %s111
      %p120 = scmp.eq.s32.totalorder %s23, 0
      %p121 = por %p119, %p120
      %p122 = scmp.ne.s32.totalorder %s110, %s111
      %p123 = scmp.eq.s32.totalorder %s24, 5
      %p124 = por %p122, %p123
      %p126 = scmp.ne.s32.totalorder %s111, %s125
      %p127 = scmp.eq.s32.totalorder %s24, 0
      %p128 = por %p126, %p127
      %s130 = sadd.s32 %s129, 1
      %p133 = scmp.eq.s32.totalorder %s18, 5
      %p134 = scmp.ne.s32.totalorder %s129, %s131
      %p135 = scmp.eq.s32.totalorder %s18, 0
      %p136 = por %p134, %p135
      %p137 = scmp.ne.s32.totalorder %s129, %s131
      %p138 = scmp.eq.s32.totalorder %s23, 5
      %p139 = por %p137, %p138
      %p140 = scmp.ne.s32.totalorder %s131, %s132
      %p141 = scmp.eq.s32.totalorder %s23, 0
      %p142 = por %p140, %p141
      %p143 = scmp.ne.s32.totalorder %s131, %s132
      %p144 = scmp.eq.s32.totalorder %s24, 5
      %p145 = por %p143, %p144
      %p147 = scmp.ne.s32.totalorder %s132, %s146
      %p148 = scmp.eq.s32.totalorder %s24, 0
      %p149 = por %p147, %p148
      %s150 = ssub.s32 %s25, %s37
      %s151 = ssub.s32 %s26, %s33
      %s152 = sor.u32 %s150, %s151
      %p153 = scmp.eq.s32.totalorder %s152, 0
      %s155 = sadd.s32 %s154, 1
      %s156 = scalar_select %p153, %s154, %s155
      %p159 = pneg %p153
      %p160 = scmp.eq.s32.totalorder %s18, 5
      %p161 = por %p159, %p160
      %p162 = scmp.ne.s32.totalorder %s154, %s157
      %p163 = scmp.eq.s32.totalorder %s18, 0
      %p164 = por %p162, %p163
      %p165 = scmp.ne.s32.totalorder %s154, %s157
      %p166 = scmp.eq.s32.totalorder %s23, 5
      %p167 = por %p165, %p166
      %p168 = scmp.ne.s32.totalorder %s157, %s158
      %p169 = scmp.eq.s32.totalorder %s23, 0
      %p170 = por %p168, %p169
      %p171 = scmp.ne.s32.totalorder %s157, %s158
      %p172 = scmp.eq.s32.totalorder %s24, 5
      %p173 = por %p171, %p172
      %p175 = scmp.ne.s32.totalorder %s158, %s174
      %p176 = scmp.eq.s32.totalorder %s24, 0
      %p177 = por %p175, %p176
      %p178 = scmp.le.s32.totalorder 1, %s18
      %p179 = scmp.lt.s32.totalorder %s18, 7
      %p180 = pnand %p178, %p179
      %p181 = pneg %p180
      // Predicated region
      $region9: #{tpu_custom_call.1} parent=5 // pred_check
        _
      $region10: #{tpu_custom_call.1} parent=5 // pred_check_branch
        %183 = sbr.rel (%p180) target = $region12
      $region11: #{tpu_custom_call.1} parent=5 // pred_region
        %s184 = ssub.s32 %s18, 1
        // Predicated region
        $region13: #{tpu_custom_call.1} parent=11 // pred_check
          %p185 = pneg %p79
        $region14: #{tpu_custom_call.1} parent=11 // pred_check_branch
          %187 = sbr.rel (%p185) target = $region16
        $region15: #{tpu_custom_call.1} parent=11 // pred_region
          _
        $region16: #{tpu_custom_call.1} parent=11 // pred_fallthru
          _
        // Predicated region
        $region17: #{tpu_custom_call.1} parent=11 // pred_check
          %p188 = pneg %p100
        $region18: #{tpu_custom_call.1} parent=11 // pred_check_branch
          %190 = sbr.rel (%p188) target = $region20
        $region19: #{tpu_custom_call.1} parent=11 // pred_region
          _
        $region20: #{tpu_custom_call.1} parent=11 // pred_fallthru
          _
        // Predicated region
        $region21: #{tpu_custom_call.1} parent=11 // pred_check
          %p191 = pneg %p121
        $region22: #{tpu_custom_call.1} parent=11 // pred_check_branch
          %193 = sbr.rel (%p191) target = $region24
        $region23: #{tpu_custom_call.1} parent=11 // pred_region
          %s195 = ssub.s32 1024, 1024
          %196 = vsyncadd [#allocation6], %s195
          %s197 = sshll.u32 [#allocation5], 4
          %s198 = int_to_ptr.vmem [resolvable:$true] %s197
          %203 = dma.hbm_to_vmem [thread:$0]  %s3, 1024, %s198, [#allocation6], 128, 128, 8
        $region24: #{tpu_custom_call.1} parent=11 // pred_fallthru
          _
        // Predicated region
        $region25: #{tpu_custom_call.1} parent=11 // pred_check
          %p204 = pneg %p142
        $region26: #{tpu_custom_call.1} parent=11 // pred_check_branch
          %206 = sbr.rel (%p204) target = $region28
        $region27: #{tpu_custom_call.1} parent=11 // pred_region
          _
        $region28: #{tpu_custom_call.1} parent=11 // pred_fallthru
          _
      $region12: #{tpu_custom_call.1} parent=5 // pred_fallthru
        _
      %p207 = scmp.lt.s32.totalorder %s18, 6
      // Predicated region
      $region29: #{tpu_custom_call.1} parent=5 // pred_check
        %p208 = pneg %p207
      $region30: #{tpu_custom_call.1} parent=5 // pred_check_branch
        %210 = sbr.rel (%p208) target = $region32
      $region31: #{tpu_custom_call.1} parent=5 // pred_region
        // Predicated region
        $region33: #{tpu_custom_call.1} parent=31 // pred_check
          %p211 = pneg %p52
        $region34: #{tpu_custom_call.1} parent=31 // pred_check_branch
          %213 = sbr.rel (%p211) target = $region36
        $region35: #{tpu_custom_call.1} parent=31 // pred_region
          %s214 = sand.u32 %s42, 1
          %s215 = scalar_lea.sflag [#allocation3], %s214
          %s216 = sand.u32 %s42, 1
          %s217 = smul.addr %s216, 8
          %s218 = scalar_lea.vmem [#allocation2], %s217
          %s220 = ssub.s32 128, 128
          %221 = vsyncadd %s215, %s220
          %s222 = smul.addr %s25, 3
          %s223 = sadd.s32 %s26, %s222
          %s224 = smul.addr %s223, 128
          %s225 = scalar_lea.hbm %s0, %s224
          %s227 = sshll.u32 %s218, 4
          %s228 = int_to_ptr.vmem [resolvable:$true] %s227
          %230 = dma.hbm_to_vmem [thread:$0]  %s225, 128, %s228, %s215
        $region36: #{tpu_custom_call.1} parent=31 // pred_fallthru
          _
      $region32: #{tpu_custom_call.1} parent=5 // pred_fallthru
        _
      %p231 = scmp.le.s32.totalorder 1, %s18
      %p232 = scmp.lt.s32.totalorder %s18, 7
      %p233 = pnand %p231, %p232
      %p234 = pneg %p233
      // Predicated region
      $region37: #{tpu_custom_call.1} parent=5 // pred_check
        _
      $region38: #{tpu_custom_call.1} parent=5 // pred_check_branch
        %236 = sbr.rel (%p233) target = $region40
      $region39: #{tpu_custom_call.1} parent=5 // pred_region
        %s237 = ssub.s32 %s18, 1
        %s238 = sand.u32 %s45, 1
        %s239 = scalar_lea.sflag [#allocation3], %s238
        %s240 = sand.u32 %s45, 1
        %s241 = smul.addr %s240, 8
        %s242 = scalar_lea.vmem [#allocation2], %s241
        // Predicated region
        $region41: #{tpu_custom_call.1} parent=39 // pred_check
          %p243 = pneg %p58
        $region42: #{tpu_custom_call.1} parent=39 // pred_check_branch
          %245 = sbr.rel (%p243) target = $region44
        $region43: #{tpu_custom_call.1} parent=39 // pred_region
          %246 = dma.done %s239, 128
        $region44: #{tpu_custom_call.1} parent=39 // pred_fallthru
          _
        // Predicated region
        $region45: #{tpu_custom_call.1} parent=39 // pred_check
          %p247 = pneg %p121
        $region46: #{tpu_custom_call.1} parent=39 // pred_check_branch
          %249 = sbr.rel (%p247) target = $region48
        $region47: #{tpu_custom_call.1} parent=39 // pred_region
          %250 = dma.done [#allocation6], 1024
        $region48: #{tpu_custom_call.1} parent=39 // pred_fallthru
          _
        %s251 = sand.u32 %s45, 1
        %s252 = scalar_lea.sflag [#allocation3], %s251
        %s253 = sand.u32 %s45, 1
        %s254 = smul.addr %s253, 8
        %s255 = scalar_lea.vmem [#allocation2], %s254
        %p256 = pneg %p58
        %p257 = pneg %p55
        %p258 = pneg %p79
        %p259 = pneg %p76
        %p260 = pneg %p100
        %p261 = pneg %p97
        %p262 = pneg %p121
        %p263 = pneg %p118
        %p264 = pneg %p142
        %p265 = pneg %p139
        %p266 = pneg %p170
        %p267 = pneg %p167
        %s268 = sand.u32 %s157, 1
        %s269 = scalar_lea.sflag [#allocation4], %s268
        %s270 = sand.u32 %s157, 1
        %s271 = smul.addr %s270, 8
        %s272 = scalar_lea.vmem [#allocation7], %s271
        %v274 = vld [vmem:[%s242] sm:$0xff]
        %v275 = vld [vmem:[%s1] sm:$0x1]
        %v276 = vld [vmem:[%s2] sm:$0x1]
        %vm277 = vcmask 523264
        %v278 = vsel %vm277, %v274, 0.0
        %279 = vadd.xlane.f32.xlu0 %v278
        %v280 = vpop.xlane.xlu0 %279
        %v281 = vrcp.pop 64.0
        %v282 = vmul.f32 %v280, %v281
        %v283 = vsub.f32 %v274, %v282
        %v284 = vmul.f32 %v283, %v283
        %v285 = vsel %vm277, %v284, 0.0
        %286 = vadd.xlane.f32.xlu0 %v285
        %v287 = vpop.xlane.xlu0 %286
        %v288 = vmul.f32 %v287, %v281
        %v289 = vadd.f32 %v288, 1e-05
        %v290 = vrsqrt.pop %v289
        %v291 = vmul.f32 %v283, %v290
        %v293 = vlaneseq
        %v294 = vshrl.u32 %v293, 7
        %v295 = vsub.s32 0, %v294
        %v296 = vrot.slane %v275, %v295
        %v298 = vmul.f32 %v291, %v296
        %v300 = vlaneseq
        %v301 = vshrl.u32 %v300, 7
        %v302 = vsub.s32 0, %v301
        %v303 = vrot.slane %v276, %v302
        %v305 = vadd.f32 %v298, %v303
        %v306 = vpack.c.bf16 %v305, %v305
        %v307 = vld [vmem:[#allocation5] sm:$0xff]
        %v308 = vld [vmem:[#allocation5 + $0x8] sm:$0xff]
        %v309 = vld [vmem:[#allocation5 + $0x10] sm:$0xff]
        %v310 = vld [vmem:[#allocation5 + $0x18] sm:$0xff]
        %v311 = vld [vmem:[#allocation5 + $0x20] sm:$0xff]
        %v312 = vld [vmem:[#allocation5 + $0x28] sm:$0xff]
        %v313 = vld [vmem:[#allocation5 + $0x30] sm:$0xff]
        %v314 = vld [vmem:[#allocation5 + $0x38] sm:$0xff]
        %v315 = vld [vmem:[%s4] sm:$0x3]
        %v317 = vlaneseq
        %v318 = vshrl.u32 %v317, 7
        %v319 = vsub.s32 0, %v318
        %v320 = vrot.slane %v315, %v319
        %v321 = vlaneseq
        %v322 = vshrl.u32 %v321, 7
        %v323 = vsub.s32 1, %v322
        %v324 = vrot.slane %v315, %v323
        %v335 = vunpack.c.l.b16 %v307
        %v336 = vunpack.c.h.b16 %v307
        %v337 = vunpack.c.l.b16 %v308
        %v338 = vunpack.c.h.b16 %v308
        %v339 = vunpack.c.l.b16 %v309
        %v340 = vunpack.c.h.b16 %v309
        %v341 = vunpack.c.l.b16 %v310
        %v342 = vunpack.c.h.b16 %v310
        %v343 = vunpack.c.l.b16 %v311
        %v344 = vunpack.c.h.b16 %v311
        %v345 = vunpack.c.l.b16 %v312
        %v346 = vunpack.c.h.b16 %v312
        %v347 = vunpack.c.l.b16 %v313
        %v348 = vunpack.c.h.b16 %v313
        %v349 = vunpack.c.l.b16 %v314
        %v350 = vunpack.c.h.b16 %v314
        %v351 = vpack.c.b16 %v337, %v335
        %v352 = vpack.c.b16 %v338, %v336
        %v353 = vpack.c.b16 %v341, %v339
        %v354 = vpack.c.b16 %v342, %v340
        %v355 = vpack.c.b16 %v345, %v343
        %v356 = vpack.c.b16 %v346, %v344
        %v357 = vpack.c.b16 %v349, %v347
        %v358 = vpack.c.b16 %v350, %v348
        %v368 = vsel %vm277, %v306, 0
        %370 = vmatprep.subr.bf16.mxu0 %v352
        %371 = vmatpush1.bf16.msra.mxu0 %v351
        %372 = vmatprep.subr.bf16.mxu0 %v354
        %373 = vmatpush1.bf16.msra.mxu0 %v353
        %374 = vmatprep.subr.bf16.mxu0 %v356
        %375 = vmatpush1.bf16.msra.mxu0 %v355
        %376 = vmatprep.subr.bf16.mxu0 %v358
        %377 = vmatpush1.bf16.msra.mxu0 %v357
        %378 = vmatprep.subr.bf16.mxu0 0
        %379 = vmatpush1.bf16.msra.mxu0 0
        %380 = vmatprep.subr.bf16.mxu0 0
        %381 = vmatpush1.bf16.msra.mxu0 0
        %382 = vmatprep.subr.bf16.mxu0 0
        %383 = vmatpush1.bf16.msra.mxu0 0
        %384 = vmatprep.subr.bf16.mxu0 0
        %385 = vmatpush1.bf16.msra.mxu0 0
        %386 = vmatprep.subr.bf16.mxu0 0
        %387 = vmatpush1.bf16.msra.mxu0 0
        %388 = vmatprep.subr.bf16.mxu0 0
        %389 = vmatpush1.bf16.msra.mxu0 0
        %390 = vmatprep.subr.bf16.mxu0 0
        %391 = vmatpush1.bf16.msra.mxu0 0
        %392 = vmatprep.subr.bf16.mxu0 0
        %393 = vmatpush1.bf16.msra.mxu0 0
        %394 = vmatprep.subr.bf16.mxu0 0
        %395 = vmatpush1.bf16.msra.mxu0 0
        %396 = vmatprep.subr.bf16.mxu0 0
        %397 = vmatpush1.bf16.msra.mxu0 0
        %398 = vmatprep.subr.bf16.mxu0 0
        %399 = vmatpush1.bf16.msra.mxu0 0
        %400 = vmatprep.subr.bf16.mxu0 0
        %401 = vmatpush1.bf16.msra.mxu0 0
        %402 = vmatprep.mubr.bf16.mxu0 0
        %403 = vmatmul.mubr.bf16.gmra.mrb[0].mxu0 %v368
        %v404 = vpop.f32.mrb[0].mxu0
        %v405 = vadd.f32 %v320, %v404
        %v406 = vpop.f32.mrb[0].mxu0
        %v407 = vadd.f32 %v324, %v406
        %v408 = vpop.f32.mrb[0].mxu0
        %v409 = vpop.f32.mrb[0].mxu0
        %410 = vdwg.mxu0
        %v411 = vpack.c.bf16 %v405, %v405
        %v412 = vpack.c.bf16 %v407, %v407
        %v415 = vunpack.c.l.b16 %v411
        %v416 = vunpack.c.l.b16 %v412
        %v417 = vpack.c.b16 %v416, %v415
        %vm419 = vcmask 1043456
        %vm420 = vcmask 523268
        %vm421 = vmor %vm420, %vm419
        %422 = vst.msk [vmem:[%s272] sm:$0xff] %vm421, %v417
        %s423 = sand.u32 %s157, 1
        %s424 = scalar_lea.sflag [#allocation4], %s423
        %s425 = sand.u32 %s157, 1
        %s426 = smul.addr %s425, 8
        %s427 = scalar_lea.vmem [#allocation7], %s426
        // Predicated region
        $region49: #{tpu_custom_call.1} parent=39 // pred_check
          %p428 = pneg %p167
        $region50: #{tpu_custom_call.1} parent=39 // pred_check_branch
          %430 = sbr.rel (%p428) target = $region52
        $region51: #{tpu_custom_call.1} parent=39 // pred_region
          %s432 = ssub.s32 128, 128
          %433 = vsyncadd %s424, %s432
          %s434 = smul.addr %s28, 2
          %s435 = smul.addr %s27, 6
          %s436 = sadd.s32 %s434, %s435
          %s437 = smul.addr %s436, 64
          %s438 = scalar_lea.hbm %s5, %s437
          %s440 = sshll.u32 %s427, 4
          %s441 = int_to_ptr.vmem [resolvable:$true] %s440
          %443 = dma.vmem_to_hbm [thread:$0]  %s441, 128, %s438, %s424
        $region52: #{tpu_custom_call.1} parent=39 // pred_fallthru
          _
      $region40: #{tpu_custom_call.1} parent=5 // pred_fallthru
        _
      %p444 = scmp.le.s32.totalorder 2, %s18
      // Predicated region
      $region53: #{tpu_custom_call.1} parent=5 // pred_check
        %p445 = pneg %p444
      $region54: #{tpu_custom_call.1} parent=5 // pred_check_branch
        %447 = sbr.rel (%p445) target = $region56
      $region55: #{tpu_custom_call.1} parent=5 // pred_region
        %s448 = ssub.s32 %s18, 2
        // Predicated region
        $region57: #{tpu_custom_call.1} parent=55 // pred_check
          %p449 = pneg %p173
        $region58: #{tpu_custom_call.1} parent=55 // pred_check_branch
          %451 = sbr.rel (%p449) target = $region60
        $region59: #{tpu_custom_call.1} parent=55 // pred_region
          %s452 = sand.u32 %s158, 1
          %s453 = scalar_lea.sflag [#allocation4], %s452
          %s454 = sand.u32 %s158, 1
          %s455 = smul.addr %s454, 8
          %s456 = scalar_lea.vmem [#allocation7], %s455
          %457 = dma.done %s453, 128
        $region60: #{tpu_custom_call.1} parent=55 // pred_fallthru
          _
      $region56: #{tpu_custom_call.1} parent=5 // pred_fallthru
        _
    $region6: #{tpu_custom_call.1} parent=1 // loop_footer
      %s22 = sadd.s32 1, %s18
    $region7: #{tpu_custom_call.1} parent=1 // loop_footer_branch
      %17 = sbr.rel target = $region3
    $region8: #{tpu_custom_call.1} parent=1 // loop_exit
      _
    %458 = vsyncpa [#allocation3], 1
    %s459 = scalar_lea.sflag [#allocation3], 1
    %460 = vsyncpa %s459, 1
    %461 = vsyncpa [#allocation6], 1
    %462 = vsyncpa [#allocation4], 1
    %s463 = scalar_lea.sflag [#allocation4], 1
    %464 = vsyncpa %s463, 1

</llo_original>
